<compile_context>
chip_gen: v5e
topology: v5e:2x2
jax: 0.10.0
libtpu: 0.0.40
codegen_flags: <defaults>
</compile_context>

<pallas_src>
import math

import jax
import jax.numpy as jnp
from jax import lax
from jax.experimental import pallas as pl
from jax.experimental.pallas import tpu as pltpu


def _round_up(x: int, m: int) -> int:
    return ((x + m - 1) // m) * m


def _lcm(a: int, b: int) -> int:
    return a * b // math.gcd(a, b)


def _default_vmem_budget() -> int:
    """Scoped-VMEM budget: ~7/8 of physical VMEM, conservative fallback."""
    cap = None
    try:
        info = pltpu.get_tpu_info()
        cap = getattr(info, "vmem_capacity_bytes", None)
    except Exception:
        cap = None
    if not cap:
        cap = 64 << 20                      # v7x physical — safe everywhere
    return int(min(max(cap * 7 // 8, 32 << 20), 112 << 20))


def _make_kernel(*, temperature: float, n_valid: int, n_pad: int, n_half: int,
                 block_rows: int, feat_dim: int):
    inv_temp = 1.0 / float(temperature)
    pad_rows = float(n_pad - n_valid)       # each zero pad row adds exp(0)=1 per column
    n_slabs = block_rows // 8

    def kernel(feat_hbm, out_ref, fn_ref, acc_ref, copy_sem):
        h = pl.program_id(0)                # column half (parallel — 2 TCs on v7x)
        k = pl.program_id(1)                # row tile (arbitrary — carried accumulator)
        last_k = pl.num_programs(1) - 1

        # ---- init (first row tile of this half): one HBM->VMEM copy, zero acc ----
        @pl.when(k == 0)
        def _init():
            cp = pltpu.make_async_copy(feat_hbm, fn_ref, copy_sem)
            cp.start()
            cp.wait()
            acc_ref[...] = jnp.zeros_like(acc_ref)

        row0 = pl.multiple_of(k * block_rows, block_rows)
        col0 = pl.multiple_of(h * n_half, 8)

        # ---- per-tile: lane-contracted matmul (1/T folded into lhs), exp, fold ----
        lhs = fn_ref[pl.ds(row0, block_rows), :] * inv_temp          # (TM, D) op dtype
        rhs = fn_ref[pl.ds(col0, n_half), :]                         # (Ncols, D)
        sim = lax.dot_general(lhs, rhs,
                              dimension_numbers=(((1,), (1,)), ((), ())),
                              preferred_element_type=jnp.float32)    # (TM, Ncols) f32
        e = jnp.exp(sim)

        # Pairwise-tree fold of TM rows down to 8 sublanes (pure VALU adds).
        parts = [e[8 * r:8 * (r + 1), :] for r in range(n_slabs)]
        while len(parts) > 1:
            nxt = [parts[i] + parts[i + 1] for i in range(0, len(parts) - 1, 2)]
            if len(parts) % 2:
                nxt.append(parts[-1])
            parts = nxt
        acc_ref[...] += parts[0]                                     # (8, Ncols) f32

        # ---- finalize (last row tile): column sums -> per-half partial loss ----
        @pl.when(k == last_k)
        def _finalize():
            colsum = jnp.sum(acc_ref[...], axis=0, keepdims=True) - pad_rows  # (1, Ncols)

            # Diagonal / offset(-1) terms recomputed from the SAME rounded
            # operands: window of Ncols+8 rows (8 extra zero rows allocated),
            # f32 products are exact for bf16 inputs -> consistent cancellation.
            w = fn_ref[pl.ds(col0, n_half + 8), :].astype(jnp.float32)   # (Ncols+8, D)
            f0 = w[0:n_half, :]                                          # fn[j]
            f1 = pltpu.roll(w, shift=n_half + 7, axis=0)[0:n_half, :]    # fn[j+1]
            ones8 = jnp.ones((8, feat_dim), jnp.float32)
            d_row = lax.dot_general(ones8, f0 * f0, (((1,), (1,)), ((), ())),
                                    preferred_element_type=jnp.float32)[0:1, :]
            rd_row = lax.dot_general(ones8, f0 * f1, (((1,), (1,)), ((), ())),
                                     preferred_element_type=jnp.float32)[0:1, :]

            denom = colsum - jnp.exp(d_row * inv_temp) - jnp.exp(rd_row * inv_temp)

            col_idx = col0 + lax.broadcasted_iota(jnp.int32, (1, n_half), 1)
            valid = col_idx < (n_valid - 1)

            # log(positives[j]) = sim[j+1, j] / T  -> no exp/log for the numerator.
            log_pos = inv_temp * jnp.sum(jnp.where(valid, rd_row, 0.0),
                                         axis=1, keepdims=True)          # (1, 1)
            safe_denom = jnp.where(valid, denom, 1.0)
            log_den = jnp.sum(jnp.where(valid, jnp.log(safe_denom), 0.0),
                              axis=1, keepdims=True)                     # (1, 1)

            out_ref[...] = jnp.concatenate([log_den, log_pos], axis=1)    # (1, 2)

    return kernel


def hatcl_loss(features, temperature: float = 0.5, *, block_rows=None,
               num_col_blocks: int = 2, operand_dtype=jnp.bfloat16,
               vmem_budget_bytes=None):
    """features: (N, D). Returns scalar float32 HATCL loss."""
    features = jnp.asarray(features)
    n, d = features.shape
    assert n >= 2, "HATCL loss needs at least 2 samples"

    op_dtype = jnp.dtype(operand_dtype)
    op_bytes = op_dtype.itemsize
    ncb = max(1, int(num_col_blocks))
    budget = int(vmem_budget_bytes) if vmem_budget_bytes else _default_vmem_budget()

    d_pad = _round_up(d, 128)                    # lane-padded feature dim (VMEM bytes)

    if block_rows is None:
        # Budget-driven TM: residents (fn copy + acc + epilogue temporaries)
        # come off the top, the (TM, Ncols) f32 sim/e slab (~10 B/elem incl.
        # slack) sets TM.
        n_est = _round_up(n, 8 * ncb)
        n_half_est = n_est // ncb
        resident = (n_est + 8) * d_pad * op_bytes
        acc_b = 8 * _round_up(n_half_est, 128) * 4
        epi_b = 3 * (n_half_est + 8) * d_pad * 4
        avail = budget - resident - acc_b - epi_b - (2 << 20)
        per_row = 10 * _round_up(n_half_est, 128)
        tm = avail // per_row if avail > 0 else 8
        tm = int(max(8, min(tm, 512, _round_up(n, 8))))
        tm = (tm // 8) * 8
    else:
        tm = max(8, _round_up(int(block_rows), 8))

    n_pad = _round_up(n, _lcm(tm, 8 * ncb))      # divisible by tm and by 8*ncb
    n_half = n_pad // ncb
    n_alloc = n_pad + 8                          # 8 extra zero rows for the j+1 window

    # ---- normalize once in the wrapper (f32), cast to the MXU operand dtype ----
    f32 = features.astype(jnp.float32)
    nrm = jnp.sqrt(jnp.sum(f32 * f32, axis=-1, keepdims=True))
    fn = (f32 / jnp.maximum(nrm, 1e-12)).astype(op_dtype)          # F.normalize(p=2)
    fn = jnp.concatenate([fn, jnp.zeros((n_alloc - n, d), op_dtype)], axis=0)

    kernel = _make_kernel(temperature=temperature, n_valid=n, n_pad=n_pad,
                          n_half=n_half, block_rows=tm, feat_dim=d)

    parts = pl.pallas_call(
        kernel,
        out_shape=jax.ShapeDtypeStruct((ncb, 1, 2), jnp.float32),
        grid_spec=pltpu.PrefetchScalarGridSpec(
            num_scalar_prefetch=0,
            grid=(ncb, n_pad // tm),
            in_specs=[pl.BlockSpec(memory_space=pl.ANY)],          # raw HBM, no auto-DMA
            out_specs=pl.BlockSpec((None, 1, 2), lambda h, k: (h, 0, 0)),
            scratch_shapes=[
                pltpu.VMEM((n_alloc, d), op_dtype),                # single resident fn copy
                pltpu.VMEM((8, n_half), jnp.float32),              # per-sublane column sums
                pltpu.SemaphoreType.DMA(()),                       # prologue copy semaphore
            ],
        ),
        compiler_params=pltpu.CompilerParams(
            dimension_semantics=("parallel", "arbitrary"),
            vmem_limit_bytes=int(budget),
        ),
    )(fn)

    log_den = jnp.sum(parts[:, 0, 0])
    log_pos = jnp.sum(parts[:, 0, 1])
    # loss = -mean(log(pos/denom)) = (sum log denom - sum log pos) / (N-1)
    return (log_den - log_pos) / (n - 1)


def _reference(features, temperature: float = 0.5):
    """Pure-JAX mirror of the PyTorch HATCL_LOSS forward (all f32)."""
    nrm = jnp.sqrt(jnp.sum(features * features, axis=-1, keepdims=True))
    fn = features / jnp.maximum(nrm, 1e-12)
    sim = fn @ fn.T
    e = jnp.exp(sim / temperature)
    e = e - jnp.diag(jnp.diag(e))
    pos = jnp.diagonal(e, offset=-1)
    denom = jnp.sum(e[:, :-1], axis=0) - pos
    return -jnp.mean(jnp.log(pos / denom))


if __name__ == "__main__":
    key = jax.random.PRNGKey(0)
    N, D = 16, 32
    features = jax.random.normal(key, (N, D), dtype=jnp.float32)

    ref = jax.block_until_ready(_reference(features, temperature=0.5))

    # Multi-step accumulator path: 2 column halves x 2 row tiles.
    loss_tiled = jax.block_until_ready(
        hatcl_loss(features, temperature=0.5, block_rows=8))
    assert jnp.allclose(loss_tiled, ref, rtol=5e-3, atol=5e-3), (loss_tiled, ref)

    # Default path: budget-derived block_rows (single row tile per half here).
    loss_auto = jax.block_until_ready(hatcl_loss(features, temperature=0.5))
    assert jnp.allclose(loss_auto, ref, rtol=5e-3, atol=5e-3), (loss_auto, ref)

    print("KERNEL_OK")
</pallas_src>

<mosaic_0001>
module attributes {stable_mosaic.version = 11 : i64} {
  func.func @kernel(%arg0: i32, %arg1: i32, %arg2: memref<24x32xbf16, #tpu.memory_space<any>>, %arg3: memref<1x1x2xf32, #tpu.memory_space<vmem>>, %arg4: memref<24x32xbf16, #tpu.memory_space<vmem>>, %arg5: memref<8x8xf32, #tpu.memory_space<vmem>>, %arg6: memref<!tpu.dma_semaphore, #tpu.memory_space<semaphore_mem>>) attributes {dimension_semantics = [#tpu.dimension_semantics<parallel>, #tpu.dimension_semantics<arbitrary>], iteration_bounds = array<i64: 2, 2>, scalar_prefetch = 0 : i64, scratch_operands = 3 : i64, tpu.core_type = #tpu.core_type<tc>, window_params = [{}, {transform_indices = @transform_1, window_bounds = array<i64: 1, 1, 2>}]} {
    %c0_i32 = arith.constant 0 : i32
    %0 = arith.cmpi eq, %arg1, %c0_i32 : i32
    %1 = arith.extui %0 : i1 to i32
    %c0_i32_0 = arith.constant 0 : i32
    %2 = arith.cmpi ne, %1, %c0_i32_0 : i32
    scf.if %2 {
      tpu.enqueue_dma source(%arg2 : memref<24x32xbf16, #tpu.memory_space<any>>) target(%arg4 : memref<24x32xbf16, #tpu.memory_space<vmem>>) target_semaphore(%arg6 : memref<!tpu.dma_semaphore, #tpu.memory_space<semaphore_mem>>)
      tpu.wait_dma2 semaphore(%arg6 : memref<!tpu.dma_semaphore, #tpu.memory_space<semaphore_mem>>) src(%arg2 : memref<24x32xbf16, #tpu.memory_space<any>>) dst(%arg4 : memref<24x32xbf16, #tpu.memory_space<vmem>>)
      %cst_9 = arith.constant 0.000000e+00 : f32
      %21 = vector.broadcast %cst_9 : f32 to vector<8x8xf32>
      %c0_10 = arith.constant 0 : index
      %c0_11 = arith.constant 0 : index
      %22 = vector.load %arg5[%c0_10, %c0_11] : memref<8x8xf32, #tpu.memory_space<vmem>>, vector<8x8xf32>
      tpu.vector_store %arg5[%c0_10, %c0_11], %21 {strides = array<i32>} : memref<8x8xf32, #tpu.memory_space<vmem>>, vector<8x8xf32>,
    } else {
    }
    %c8_i32 = arith.constant 8 : i32
    %3 = arith.muli %arg1, %c8_i32 : i32
    %4 = tpu.assume_multiple %3, 8 : i32
    %c8_i32_1 = arith.constant 8 : i32
    %5 = arith.muli %arg0, %c8_i32_1 : i32
    %6 = tpu.assume_multiple %5, 8 : i32
    %7 = arith.index_cast %4 : i32 to index
    %c0 = arith.constant 0 : index
    %8 = vector.load %arg4[%7, %c0] : memref<24x32xbf16, #tpu.memory_space<vmem>>, vector<8x32xbf16>
    %cst = arith.constant 2.000000e+00 : bf16
    %9 = vector.broadcast %cst : bf16 to vector<8x32xbf16>
    %10 = arith.mulf %8, %9 : vector<8x32xbf16>
    %11 = arith.index_cast %6 : i32 to index
    %c0_2 = arith.constant 0 : index
    %12 = vector.load %arg4[%11, %c0_2] : memref<24x32xbf16, #tpu.memory_space<vmem>>, vector<8x32xbf16>
    %cst_3 = arith.constant dense<0.000000e+00> : vector<8x8xf32>
    %13 = tpu.matmul %10, %12, %cst_3 {dimension_numbers = #tpu.dot_dimension_numbers<[1], [1], [0], [0], [0, 0, 1, 0], [], []>} : vector<8x32xbf16>, vector<8x32xbf16>, vector<8x8xf32> -> vector<8x8xf32>
    %14 = math.exp %13 : vector<8x8xf32>
    %c0_4 = arith.constant 0 : index
    %c0_5 = arith.constant 0 : index
    %15 = vector.load %arg5[%c0_4, %c0_5] : memref<8x8xf32, #tpu.memory_space<vmem>>, vector<8x8xf32>
    %16 = arith.addf %15, %14 : vector<8x8xf32>
    %c0_6 = arith.constant 0 : index
    %c0_7 = arith.constant 0 : index
    %17 = vector.load %arg5[%c0_6, %c0_7] : memref<8x8xf32, #tpu.memory_space<vmem>>, vector<8x8xf32>
    tpu.vector_store %arg5[%c0_6, %c0_7], %16 {strides = array<i32>} : memref<8x8xf32, #tpu.memory_space<vmem>>, vector<8x8xf32>,
    %c1_i32 = arith.constant 1 : i32
    %18 = arith.cmpi eq, %arg1, %c1_i32 : i32
    %19 = arith.extui %18 : i1 to i32
    %c0_i32_8 = arith.constant 0 : i32
    %20 = arith.cmpi ne, %19, %c0_i32_8 : i32
    scf.if %20 {
      %c0_9 = arith.constant 0 : index
      %c0_10 = arith.constant 0 : index
      %21 = vector.load %arg5[%c0_9, %c0_10] : memref<8x8xf32, #tpu.memory_space<vmem>>, vector<8x8xf32>
      %cst_11 = arith.constant dense<0.000000e+00> : vector<8xf32>
      %22 = vector.multi_reduction <add>, %21, %cst_11 [0] : vector<8x8xf32> to vector<8xf32>
      %23 = vector.shape_cast %22 : vector<8xf32> to vector<1x8xf32>
      %cst_12 = arith.constant 0.000000e+00 : f32
      %24 = vector.broadcast %cst_12 : f32 to vector<1x8xf32>
      %25 = arith.subf %23, %24 : vector<1x8xf32>
      %26 = arith.index_cast %6 : i32 to index
      %c0_13 = arith.constant 0 : index
      %27 = vector.load %arg4[%26, %c0_13] : memref<24x32xbf16, #tpu.memory_space<vmem>>, vector<16x32xbf16>
      %28 = arith.extf %27 : vector<16x32xbf16> to vector<16x32xf32>
      %29 = vector.extract_strided_slice %28 {offsets = [0, 0], sizes = [8, 32], strides = [1, 1]} : vector<16x32xf32> to vector<8x32xf32>
      %c15_i32 = arith.constant 15 : i32
      %30 = tpu.dynamic_rotate %28 by %c15_i32 dim 0 : vector<16x32xf32>, i32 -> vector<16x32xf32>
      %31 = vector.extract_strided_slice %30 {offsets = [0, 0], sizes = [8, 32], strides = [1, 1]} : vector<16x32xf32> to vector<8x32xf32>
      %cst_14 = arith.constant 1.000000e+00 : f32
      %32 = vector.broadcast %cst_14 : f32 to vector<8x32xf32>
      %33 = arith.mulf %29, %29 : vector<8x32xf32>
      %cst_15 = arith.constant dense<0.000000e+00> : vector<8x8xf32>
      %34 = tpu.matmul %32, %33, %cst_15 {dimension_numbers = #tpu.dot_dimension_numbers<[1], [1], [0], [0], [0, 0, 1, 0], [], []>} : vector<8x32xf32>, vector<8x32xf32>, vector<8x8xf32> -> vector<8x8xf32>
      %35 = vector.extract_strided_slice %34 {offsets = [0, 0], sizes = [1, 8], strides = [1, 1]} : vector<8x8xf32> to vector<1x8xf32>
      %36 = arith.mulf %29, %31 : vector<8x32xf32>
      %cst_16 = arith.constant dense<0.000000e+00> : vector<8x8xf32>
      %37 = tpu.matmul %32, %36, %cst_16 {dimension_numbers = #tpu.dot_dimension_numbers<[1], [1], [0], [0], [0, 0, 1, 0], [], []>} : vector<8x32xf32>, vector<8x32xf32>, vector<8x8xf32> -> vector<8x8xf32>
      %38 = vector.extract_strided_slice %37 {offsets = [0, 0], sizes = [1, 8], strides = [1, 1]} : vector<8x8xf32> to vector<1x8xf32>
      %cst_17 = arith.constant 2.000000e+00 : f32
      %39 = vector.broadcast %cst_17 : f32 to vector<1x8xf32>
      %40 = arith.mulf %35, %39 : vector<1x8xf32>
      %41 = math.exp %40 : vector<1x8xf32>
      %42 = arith.subf %25, %41 : vector<1x8xf32>
      %cst_18 = arith.constant 2.000000e+00 : f32
      %43 = vector.broadcast %cst_18 : f32 to vector<1x8xf32>
      %44 = arith.mulf %38, %43 : vector<1x8xf32>
      %45 = math.exp %44 : vector<1x8xf32>
      %46 = arith.subf %42, %45 : vector<1x8xf32>
      %47 = tpu.iota {dimensions = array<i32: 1>} : vector<1x8xi32>
      %48 = vector.broadcast %6 : i32 to vector<1x8xi32>
      %49 = arith.addi %48, %47 : vector<1x8xi32>
      %c15_i32_19 = arith.constant 15 : i32
      %50 = vector.broadcast %c15_i32_19 : i32 to vector<1x8xi32>
      %51 = arith.cmpi slt, %49, %50 : vector<1x8xi32>
      %cst_20 = arith.constant 0.000000e+00 : f32
      %52 = vector.broadcast %cst_20 : f32 to vector<1x8xf32>
      %53 = arith.select %51, %38, %52 : vector<1x8xi1>, vector<1x8xf32>
      %cst_21 = arith.constant dense<0.000000e+00> : vector<1xf32>
      %54 = vector.multi_reduction <add>, %53, %cst_21 [1] : vector<1x8xf32> to vector<1xf32>
      %55 = vector.shape_cast %54 : vector<1xf32> to vector<1x1xf32>
      %cst_22 = arith.constant 2.000000e+00 : f32
      %56 = vector.broadcast %cst_22 : f32 to vector<1x1xf32>
      %57 = arith.mulf %56, %55 : vector<1x1xf32>
      %cst_23 = arith.constant 1.000000e+00 : f32
      %58 = vector.broadcast %cst_23 : f32 to vector<1x8xf32>
      %59 = arith.select %51, %46, %58 : vector<1x8xi1>, vector<1x8xf32>
      %60 = math.log %59 : vector<1x8xf32>
      %cst_24 = arith.constant 0.000000e+00 : f32
      %61 = vector.broadcast %cst_24 : f32 to vector<1x8xf32>
      %62 = arith.select %51, %60, %61 : vector<1x8xi1>, vector<1x8xf32>
      %cst_25 = arith.constant dense<0.000000e+00> : vector<1xf32>
      %63 = vector.multi_reduction <add>, %62, %cst_25 [1] : vector<1x8xf32> to vector<1xf32>
      %64 = vector.shape_cast %63 : vector<1xf32> to vector<1x1xf32>
      %65 = tpu.concatenate %64, %57 in 1 : vector<1x1xf32>, vector<1x1xf32> -> vector<1x2xf32>
      %c0_26 = arith.constant 0 : index
      %c0_27 = arith.constant 0 : index
      %c0_28 = arith.constant 0 : index
      %66 = vector.load %arg3[%c0_26, %c0_27, %c0_28] : memref<1x1x2xf32, #tpu.memory_space<vmem>>, vector<1x1x2xf32>
      %67 = vector.shape_cast %66 : vector<1x1x2xf32> to vector<1x2xf32>
      %68 = vector.shape_cast %65 : vector<1x2xf32> to vector<1x1x2xf32>
      tpu.vector_store %arg3[%c0_26, %c0_27, %c0_28], %68 {strides = array<i32>} : memref<1x1x2xf32, #tpu.memory_space<vmem>>, vector<1x1x2xf32>,
    } else {
    }
    return
  }
  func.func @transform_1(%arg0: i32, %arg1: i32) -> (i32, i32, i32) {
    %c0_i32 = arith.constant 0 : i32
    %c0_i32_0 = arith.constant 0 : i32
    %c0_i32_1 = arith.constant 0 : i32
    return %arg0, %c0_i32, %c0_i32_0 : i32, i32, i32
  }
}

</mosaic_0001>

<llo_original>
// kernel: tpu_custom_call.1
$region0: #{tpu_custom_call.1}
  #allocation0 [shape = 'u32[]', space=smem, size = 0x4, offset = 0x4, fixed_abs, tag = 'smem constant byte address 0x4 - core index']
  #allocation1 [shape = 'u32[72,128]{1,0:T(1,128)}', space=vmem, size = 0x9000, scoped, tag = 'internal scratch']
  #allocation2 [shape = 'bf16[24,32]{1,0:T(8,128)(2,1)}', space=vmem, size = 0x1800, scoped, tag = 'scratch operand']
  #allocation3 [shape = 'f32[8,8]{1,0:T(8,128)}', space=vmem, size = 0x1000, scoped, tag = 'scratch operand']
  #allocation4 [shape = 's32[1]{0}', space=sflag, size = 0x4, scoped, tag = 'scratch operand']
  #allocation7 [shape = 's32[]', space=sflag, size = 0x4, offset = 0, fixed_abs, tag = 'sflag constant byte address 0x0 - dummy sync flag']
  #allocation8 [shape = 's32[]', space=sflag, size = 0x4, offset = 0, fixed_abs, tag = 'sflag constant byte address 0x0 - dummy sync flag']
  #allocation9 [shape = 'u32[]', space=smem, size = 0x4, offset = 0x44, fixed_abs, tag = 'smem constant byte address 0x44 - assertion arg 0']
  #allocation10 [shape = 'u32[]', space=smem, size = 0x4, offset = 0x48, fixed_abs, tag = 'smem constant byte address 0x48 - assertion arg 1']
  %s0 = inlined_call_operand.hbm [shape: bf16[24,32], index: 0, kind: input, shape index: {}]
  %s1 = inlined_call_operand.hbm [shape: f32[2,1,2], index: 1, kind: output, shape index: {}]
  %s2 = sld [smem:[#allocation0]]
  $region37: #{tpu_custom_call.1} parent=0
    _
  %s4 = ssub.s32 1, %s2
  %s5 = scalar_select 0, %s4, %s2
  $region1: #{tpu_custom_call.1} parent=0
    #allocation5 [shape = 'u8[1024]{0}', space=vmem, size = 0x400, scoped, tag = 'output window, operand 0']
    #allocation6 [shape = 's32[2]{0}', space=sflag, size = 0x8, scoped, tag = 'scoped memory for tpu_custom_call.1']
    %6 = vsyncpa [#allocation6], 0
    %s7 = scalar_lea.sflag [#allocation6], 1
    %8 = vsyncpa %s7, 0
    loop: start=0, step=1, limit=5
    $region2: #{tpu_custom_call.1} parent=1 // loop_pre_header
      _
    $region3: #{tpu_custom_call.1} parent=1 // loop_header
      %s10 = sphi 0, %s14
      %p11 = scmp.ge.s32.totalorder %s10, 5
      %s16 = sphi 0, %s26
      %s17 = sphi 0, %s22
      %s18 = sphi 0, %s16
      %s19 = sphi 0, %s17
      %s29 = sphi 0, %s31
      %s32 = sphi 0, %s29
      %s42 = sphi 0, %s32
    $region4: #{tpu_custom_call.1} parent=1 // loop_header_branch
      %13 = sbr.rel (%p11) target = $region8
    $region5: #{tpu_custom_call.1} parent=1 // loop_body
      %s15 = ssub.s32 %s10, 1
      %s20 = sadd.s32 1, %s17
      %p21 = scmp.ge.s32.totalorder %s20, 2
      %s22 = scalar_select %p21, 0, %s20
      %s23 = sadd.s32 1, %s16
      %s24 = scalar_select %p21, %s23, %s16
      %p25 = scmp.ge.s32.totalorder %s24, 2
      %s26 = scalar_select %p25, 0, %s24
      %s27 = ssub.s32 %s16, %s26
      %p28 = scmp.eq.s32.totalorder %s27, 0
      %s30 = sadd.s32 %s29, 1
      %s31 = scalar_select %p28, %s29, %s30
      %p33 = pneg %p28
      %p34 = scmp.eq.s32.totalorder %s10, 3
      %p35 = por %p33, %p34
      %p36 = scmp.ne.s32.totalorder %s29, %s32
      %p37 = scmp.eq.s32.totalorder %s10, 0
      %p38 = por %p36, %p37
      %p39 = scmp.ne.s32.totalorder %s29, %s32
      %p40 = scmp.eq.s32.totalorder %s15, 3
      %p41 = por %p39, %p40
      %p43 = scmp.ne.s32.totalorder %s32, %s42
      %p44 = scmp.eq.s32.totalorder %s15, 0
      %p45 = por %p43, %p44
      %p46 = scmp.lt.s32.totalorder %s10, 4
      // Predicated region
      $region9: #{tpu_custom_call.1} parent=5 // pred_check
        %p47 = pneg %p46
      $region10: #{tpu_custom_call.1} parent=5 // pred_check_branch
        %49 = sbr.rel (%p47) target = $region12
      $region11: #{tpu_custom_call.1} parent=5 // pred_region
        %p50 = pneg %p38
        %p51 = pneg %p35
        %s52 = sand.u32 %s29, 1
        %s53 = scalar_lea.sflag [#allocation6], %s52
        %s54 = sand.u32 %s29, 1
        %s55 = scalar_lea.vmem [#allocation5], %s54
        %p57 = scmp.eq.s32.totalorder %s17, 0
        // Predicated region
        $region13: #{tpu_custom_call.1} parent=11 // pred_check
          %p58 = pneg %p57
        $region14: #{tpu_custom_call.1} parent=11 // pred_check_branch
          %60 = sbr.rel (%p58) target = $region16
        $region15: #{tpu_custom_call.1} parent=11 // pred_region
          // Predicated region
          $region17: #{tpu_custom_call.1} parent=15 // pred_check
            _
          $region18: #{tpu_custom_call.1} parent=15 // pred_check_branch
            %62 = sbr.rel target = $region20
          $region19: #{tpu_custom_call.1} parent=15 // pred_region
            %63 = sst [smem:[#allocation9]] [#allocation8]
            %64 = sst [smem:[#allocation10]] [#allocation7]
          $region20: #{tpu_custom_call.1} parent=15 // pred_fallthru
            _
          %66 = shalt.err (0)
          %s68 = sshll.u32 %s0, 4
          %s69 = int_to_ptr.hbm [resolvable:$true] %s68
          %s70 = sshll.u32 [#allocation2], 4
          %s71 = int_to_ptr.vmem [resolvable:$true] %s70
          %73 = dma.hbm_to_vmem [thread:$0]  %s69, 192, %s71, [#allocation4]
          %s74 = smul.u32 4, 3
          %s75 = smul.u32 %s74, 1
          %s76 = sshll.u32 %s75, 4
          %77 = dma.done [#allocation4], %s76
          %vm78 = vcmask 64512
          %79 = vst.msk [vmem:[#allocation3] sm:$0xff] %vm78, 0.0
        $region16: #{tpu_custom_call.1} parent=11 // pred_fallthru
          _
        %s80 = smul.u32 %s17, 8
        %s81 = smul.u32 %s16, 8
        %s82 = sshra.s32 %s80, 3
        %s83 = sand.u32 %s80, 7
        %s84 = smul.addr %s82, 4
        %s85 = scalar_lea.vmem [#allocation2], %s84
        %v86 = vld [vmem:[%s85] sm:$0xf]
        %v87 = vunpack.c.l.bf16 %v86
        %v88 = vmul.f32 %v87, 2.0
        %v89 = vpack.c.bf16 %v88, %v88
        %s90 = sshra.s32 %s81, 3
        %s91 = sand.u32 %s81, 7
        %s92 = smul.addr %s90, 4
        %s93 = scalar_lea.vmem [#allocation2], %s92
        %v94 = vld [vmem:[%s93] sm:$0xf]
        %vm95 = vcmask 261120
        %v97 = vsel %vm95, %v89, 0
        %v100 = vsel %vm95, %v94, 0
        %102 = vmatpush.bf16.xpose.msra.mxu0 0
        %103 = vmatpush.bf16.xpose.msra.mxu0 0
        %104 = vmatpush.bf16.xpose.msra.mxu0 0
        %105 = vmatpush.bf16.xpose.msra.mxu0 0
        %106 = vmatpush.bf16.xpose.msra.mxu0 0
        %107 = vmatpush.bf16.xpose.msra.mxu0 0
        %108 = vmatpush.bf16.xpose.msra.mxu0 0
        %109 = vmatpush.bf16.xpose.msra.mxu0 %v100
        %110 = vmatmul.bf16.gmra.mxu0 %v97
        %v111 = vpop.f32.mrf.mxu0
        %v112 = vadd.f32 0.0, %v111
        %v113 = vpop.f32.mrf.mxu0
        %114 = vdwg.mxu0
        %v115 = vmul.f32 %v112, 1.442695
        %v116 = vpow.pop %v115
        %v117 = vld [vmem:[#allocation3] sm:$0xff]
        %v118 = vadd.f32 %v117, %v116
        %vm119 = vcmask 64512
        %120 = vst.msk [vmem:[#allocation3] sm:$0xff] %vm119, %v118
        %p121 = scmp.eq.s32.totalorder %s17, 1
        // Predicated region
        $region21: #{tpu_custom_call.1} parent=11 // pred_check
          %p122 = pneg %p121
        $region22: #{tpu_custom_call.1} parent=11 // pred_check_branch
          %124 = sbr.rel (%p122) target = $region24
        $region23: #{tpu_custom_call.1} parent=11 // pred_region
          %v125 = vld [vmem:[#allocation3] sm:$0xff]
          %v126 = vsel %vm119, %v125, 0.0
          %v127 = vrot.slane %v126, 4
          %v128 = vadd.f32 %v126, %v127
          %v129 = vrot.slane %v128, 2
          %v130 = vadd.f32 %v128, %v129
          %v131 = vrot.slane %v130, 1
          %v132 = vadd.f32 %v130, %v131
          %v133 = vld [vmem:[%s93] sm:$0xf]
          %v134 = vld [vmem:[%s93 + $0x4] sm:$0xf]
          %v135 = vunpack.c.l.bf16 %v133
          %v136 = vunpack.c.l.bf16 %v134
          %v137 = vrot.slane %v135, 1
          %v138 = vrot.slane %v136, 1
          %v139 = vlaneseq
          %v140 = vshrl.u32 %v139, 7
          %vm141 = vcmp.lt.s32.totalorder %v140, 7
          %v142 = vsel %vm141, %v137, %v138
          %v143 = vmul.f32 %v135, %v135
          %v145 = vsel %vm95, 1.0, 0
          %v148 = vsel %vm95, %v143, 0
          %150 = vmatpush.xpose.msra.mxu0 0.0
          %151 = vmatpush.xpose.msra.mxu0 0.0
          %152 = vmatpush.xpose.msra.mxu0 0.0
          %153 = vmatpush.xpose.msra.mxu0 0.0
          %154 = vmatpush.xpose.msra.mxu0 0.0
          %155 = vmatpush.xpose.msra.mxu0 0.0
          %156 = vmatpush.xpose.msra.mxu0 0.0
          %157 = vmatpush.xpose.msra.mxu0 0.0
          %158 = vmatpush.xpose.msra.mxu0 0.0
          %159 = vmatpush.xpose.msra.mxu0 0.0
          %160 = vmatpush.xpose.msra.mxu0 0.0
          %161 = vmatpush.xpose.msra.mxu0 0.0
          %162 = vmatpush.xpose.msra.mxu0 0.0
          %163 = vmatpush.xpose.msra.mxu0 0.0
          %164 = vmatpush.xpose.msra.mxu0 0.0
          %165 = vmatpush.xpose.msra.mxu0 %v148
          %166 = vmatmul.f32.gmra.mxu0 %v145
          %v167 = vpop.f32.mrf.mxu0
          %v168 = vadd.f32 0.0, %v167
          %169 = vdwg.mxu0
          %v170 = vmul.f32 %v135, %v142
          %v172 = vsel %vm95, %v170, 0
          %174 = vmatpush.xpose.msra.mxu0 0.0
          %175 = vmatpush.xpose.msra.mxu0 0.0
          %176 = vmatpush.xpose.msra.mxu0 0.0
          %177 = vmatpush.xpose.msra.mxu0 0.0
          %178 = vmatpush.xpose.msra.mxu0 0.0
          %179 = vmatpush.xpose.msra.mxu0 0.0
          %180 = vmatpush.xpose.msra.mxu0 0.0
          %181 = vmatpush.xpose.msra.mxu0 0.0
          %182 = vmatpush.xpose.msra.mxu0 0.0
          %183 = vmatpush.xpose.msra.mxu0 0.0
          %184 = vmatpush.xpose.msra.mxu0 0.0
          %185 = vmatpush.xpose.msra.mxu0 0.0
          %186 = vmatpush.xpose.msra.mxu0 0.0
          %187 = vmatpush.xpose.msra.mxu0 0.0
          %188 = vmatpush.xpose.msra.mxu0 0.0
          %189 = vmatpush.xpose.msra.mxu0 %v172
          %190 = vmatmul.f32.gmra.mxu0 %v145
          %v191 = vpop.f32.mrf.mxu0
          %v192 = vadd.f32 0.0, %v191
          %193 = vdwg.mxu0
          %v194 = vmul.f32 %v168, 2.0
          %v195 = vmul.f32 %v194, 1.442695
          %v196 = vpow.pop %v195
          %v197 = vsub.f32 %v132, %v196
          %v198 = vmul.f32 %v192, 2.0
          %v199 = vmul.f32 %v198, 1.442695
          %v200 = vpow.pop %v199
          %v201 = vsub.f32 %v197, %v200
          %v202 = vlaneseq
          %v203 = vand.u32 %v202, 127
          %v204 = vstv %s81
          %v205 = vadd.s32 %v204, %v203
          %vm206 = vcmp.lt.s32.totalorder %v205, 15
          %v207 = vsel %vm206, %v192, 0.0
          %vm208 = vcmask 57344
          %v209 = vsel %vm208, %v207, 0.0
          %210 = vadd.xlane.f32.xlu0 %v209
          %v211 = vpop.xlane.xlu0 %210
          %v212 = vmul.f32 %v211, 2.0
          %v213 = vsel %vm206, %v201, 1.0
          %v214 = vlog2.pop %v213
          %v215 = vmul.f32 %v214, 0.6931472
          %v216 = vsel %vm206, %v215, 0.0
          %v217 = vsel %vm208, %v216, 0.0
          %218 = vadd.xlane.f32.xlu0 %v217
          %v219 = vpop.xlane.xlu0 %218
          %vm220 = vcmask 7168
          %v221 = vsel %vm220, %v219, %v212
          %vm222 = vcmask 8192
          %223 = vst.msk [vmem:[%s55] sm:$0x1] %vm222, %v221
        $region24: #{tpu_custom_call.1} parent=11 // pred_fallthru
          _
        %s224 = sand.u32 %s29, 1
        %s225 = scalar_lea.sflag [#allocation6], %s224
        %s226 = sand.u32 %s29, 1
        %s227 = scalar_lea.vmem [#allocation5], %s226
        // Predicated region
        $region25: #{tpu_custom_call.1} parent=11 // pred_check
          %p228 = pneg %p35
        $region26: #{tpu_custom_call.1} parent=11 // pred_check_branch
          %230 = sbr.rel (%p228) target = $region28
        $region27: #{tpu_custom_call.1} parent=11 // pred_region
          %232 = vsyncadd %s225, 0
          %s233 = scalar_lea.hbm %s1, %s16
          %s235 = sshll.u32 %s227, 4
          %s236 = int_to_ptr.vmem [resolvable:$true] %s235
          %s237 = sshll.u32 %s233, 4
          %s238 = int_to_ptr.hbm [resolvable:$true] %s237
          %240 = dma.vmem_to_hbm [thread:$0]  %s236, 16, %s238, %s225
        $region28: #{tpu_custom_call.1} parent=11 // pred_fallthru
          _
      $region12: #{tpu_custom_call.1} parent=5 // pred_fallthru
        _
      %p241 = scmp.le.s32.totalorder 1, %s10
      // Predicated region
      $region29: #{tpu_custom_call.1} parent=5 // pred_check
        %p242 = pneg %p241
      $region30: #{tpu_custom_call.1} parent=5 // pred_check_branch
        %244 = sbr.rel (%p242) target = $region32
      $region31: #{tpu_custom_call.1} parent=5 // pred_region
        %s245 = ssub.s32 %s10, 1
        // Predicated region
        $region33: #{tpu_custom_call.1} parent=31 // pred_check
          %p246 = pneg %p41
        $region34: #{tpu_custom_call.1} parent=31 // pred_check_branch
          %248 = sbr.rel (%p246) target = $region36
        $region35: #{tpu_custom_call.1} parent=31 // pred_region
          %s249 = sand.u32 %s32, 1
          %s250 = scalar_lea.sflag [#allocation6], %s249
          %s251 = sand.u32 %s32, 1
          %s252 = scalar_lea.vmem [#allocation5], %s251
          %254 = dma.done %s250, 16
        $region36: #{tpu_custom_call.1} parent=31 // pred_fallthru
          _
      $region32: #{tpu_custom_call.1} parent=5 // pred_fallthru
        _
    $region6: #{tpu_custom_call.1} parent=1 // loop_footer
      %s14 = sadd.s32 1, %s10
    $region7: #{tpu_custom_call.1} parent=1 // loop_footer_branch
      %9 = sbr.rel target = $region3
    $region8: #{tpu_custom_call.1} parent=1 // loop_exit
      _
    %255 = vsyncpa [#allocation6], 1
    %s256 = scalar_lea.sflag [#allocation6], 1
    %257 = vsyncpa %s256, 1
  %258 = vsyncmov [#allocation4]
  %s259 = vpop.sfrf %258
  %p260 = scmp.eq.s32.totalorder %s259, 0
  %p261 = pneg %p260
  %263 = shalt.err (%p261)

</llo_original>
